<compile_context>
chip_gen: v5e
topology: v5e:2x2
jax: 0.10.0
libtpu: 0.0.40
codegen_flags: <defaults>
</compile_context>

<pallas_src>
import functools
import math

import jax
import jax.numpy as jnp
from jax.experimental import pallas as pl
from jax.experimental.pallas import tpu as pltpu

OUT_LANES = 128  # lane-dense output width (adv in [0, A), val in lane A)


# ----------------------------- Pallas kernel --------------------------------
def dqn_kernel(x_ref,
               w_feat_ref, b_feat_ref,
               w_nh1_ref, b_nh1_ref,
               w_h2_ref, b_h2_ref,
               out_ref):
    x = x_ref[...]                                                     # (T, num_inputs)

    # feature: Linear + ReLU
    h = jnp.dot(x, w_feat_ref[...], preferred_element_type=jnp.float32) + b_feat_ref[...]
    h = jnp.maximum(h, 0.0)                                            # (T, 128)

    # fused (noisy1 -> [adv_hidden | val_hidden]) first layers: one N=256 MXU pass
    hh = jnp.dot(h, w_nh1_ref[...], preferred_element_type=jnp.float32) + b_nh1_ref[...]
    hh = jnp.maximum(hh, 0.0)                                          # (T, 256)

    # fused head second layers (block-diagonal weights) -> lane-dense output:
    #   lanes [0, A): advantage, lane A: value, lanes A+1..127: zeros
    out_ref[...] = jnp.dot(hh, w_h2_ref[...],
                           preferred_element_type=jnp.float32) + b_h2_ref[...]


# ------------------------------ JAX wrapper ----------------------------------
def _round_up(n, m):
    return ((n + m - 1) // m) * m


def _choose_tile_b(b):
    # small / inference batches: one padded tile (amortizes the ~0.35us/step
    # grid overhead); large training batches: 256-row tiles (still tiny VMEM).
    if b <= 256:
        return _round_up(max(b, 8), 8)
    return 256


@functools.partial(jax.jit, static_argnames=("num_actions",))
def dqn_forward(x, packed, num_actions):
    B, num_inputs = x.shape
    H1 = packed["w_feat"].shape[1]          # 128
    H2 = packed["w_nh1"].shape[1]           # 256
    OUT = packed["w_h2"].shape[1]           # 128 (lane-dense)

    tile_b = _choose_tile_b(B)
    B_pad = _round_up(B, tile_b)
    if B_pad != B:
        x = jnp.pad(x, ((0, B_pad - B), (0, 0)))
    grid = (B_pad // tile_b,)

    weight_args = (packed["w_feat"], packed["b_feat"],
                   packed["w_nh1"], packed["b_nh1"],
                   packed["w_h2"], packed["b_h2"])

    def resident_spec(a):
        # full-array block, constant index_map -> VMEM-resident across the grid
        return pl.BlockSpec(a.shape, lambda i: (0,) * a.ndim)

    in_specs = ([pl.BlockSpec((tile_b, num_inputs), lambda i: (i, 0))]
                + [resident_spec(a) for a in weight_args])
    out_specs = pl.BlockSpec((tile_b, OUT), lambda i: (i, 0))

    flops = 2 * B_pad * (num_inputs * H1 + H1 * H2 + H2 * OUT)
    bytes_accessed = 4 * (B_pad * num_inputs
                          + sum(int(a.size) for a in weight_args)
                          + B_pad * OUT)

    q = pl.pallas_call(
        dqn_kernel,
        out_shape=jax.ShapeDtypeStruct((B_pad, OUT), jnp.float32),
        grid=grid,
        in_specs=in_specs,
        out_specs=out_specs,
        compiler_params=pltpu.CompilerParams(
            dimension_semantics=("parallel",)),
        cost_estimate=pl.CostEstimate(flops=flops, transcendentals=0,
                                      bytes_accessed=bytes_accessed),
    )(x, *weight_args)

    adv = q[:B, :num_actions]
    val = q[:B, num_actions:num_actions + 1]
    # global mean over the whole batch: done outside the (batch-gridded) kernel
    # so every tile sees the same scalar, matching the PyTorch semantics exactly.
    return val + adv - jnp.mean(adv)


# --------------------------- parameter packing --------------------------------
def pack_dqn_params(p):
    """Offline (one-time) fusion of the network weights for the kernel.

    * noisy1 has no activation after it, so it is folded into the head first
      layers:  W_nh1 = W_noisy_eff @ [W_a1 | W_v1],  b_nh1 = b_noisy_eff @ W_h1 + b_h1
    * head second layers packed block-diagonally into (256, 128) so the kernel
      output is lane-dense: lanes [0, A) = advantage, lane A = value, rest 0.
    """
    A = p["w_a2"].shape[1]
    H = p["w_a1"].shape[0]
    assert A + 1 <= OUT_LANES

    w_h1 = jnp.concatenate([p["w_a1"], p["w_v1"]], axis=1)          # (H, 2H)
    b_h1 = jnp.concatenate([p["b_a1"], p["b_v1"]], axis=1)          # (1, 2H)

    # fold the (linear, no activation) noisy layer into the head first layers
    w_nh1 = p["w_noisy"] @ w_h1                                     # (H, 2H)
    b_nh1 = p["b_noisy"] @ w_h1 + b_h1                              # (1, 2H)

    w_h2 = jnp.zeros((2 * H, OUT_LANES), jnp.float32)
    w_h2 = w_h2.at[:H, :A].set(p["w_a2"])
    w_h2 = w_h2.at[H:, A].set(p["w_v2"][:, 0])
    b_h2 = jnp.zeros((1, OUT_LANES), jnp.float32)
    b_h2 = b_h2.at[:, :A].set(p["b_a2"][0])
    b_h2 = b_h2.at[:, A].set(p["b_v2"][0, 0])

    return dict(w_feat=p["w_feat"], b_feat=p["b_feat"],
                w_nh1=w_nh1, b_nh1=b_nh1,
                w_h2=w_h2, b_h2=b_h2)


# ------------------------- deterministic param init --------------------------
def _linear_init(key, fan_in, fan_out):
    """PyTorch nn.Linear default: U(-1/sqrt(fan_in), 1/sqrt(fan_in))."""
    kw, kb = jax.random.split(key)
    bound = 1.0 / math.sqrt(fan_in)
    w = jax.random.uniform(kw, (fan_in, fan_out), jnp.float32, -bound, bound)
    b = jax.random.uniform(kb, (1, fan_out), jnp.float32, -bound, bound)
    return w, b


def _scale_noise(key, size):
    x = jax.random.normal(key, (size,), jnp.float32)
    return jnp.sign(x) * jnp.sqrt(jnp.abs(x))


def _noisy_linear_init(key, fan_in, fan_out, std_init=0.5):
    """NoisyLinear params + factorized noise -> effective (training-mode) W, b."""
    kwm, kbm, kin, kout, kbias = jax.random.split(key, 5)
    mu_range = 1.0 / math.sqrt(fan_in)
    w_mu = jax.random.uniform(kwm, (fan_in, fan_out), jnp.float32, -mu_range, mu_range)
    b_mu = jax.random.uniform(kbm, (fan_out,), jnp.float32, -mu_range, mu_range)
    w_sigma = jnp.full((fan_in, fan_out), std_init / math.sqrt(fan_in), jnp.float32)
    b_sigma = jnp.full((fan_out,), std_init / math.sqrt(fan_out), jnp.float32)
    eps_in = _scale_noise(kin, fan_in)
    eps_out = _scale_noise(kout, fan_out)
    w_eps = jnp.outer(eps_in, eps_out)          # (in, out) == torch eps_out.ger(eps_in).T
    b_eps = _scale_noise(kbias, fan_out)
    w_eff = w_mu + w_sigma * w_eps
    b_eff = (b_mu + b_sigma * b_eps).reshape(1, fan_out)
    return w_eff, b_eff


def init_dqn_params(key, num_inputs, num_actions, hidden=128):
    keys = jax.random.split(key, 6)
    w_feat, b_feat = _linear_init(keys[0], num_inputs, hidden)
    w_noisy, b_noisy = _noisy_linear_init(keys[1], hidden, hidden)
    w_a1, b_a1 = _linear_init(keys[2], hidden, hidden)
    w_a2, b_a2 = _linear_init(keys[3], hidden, num_actions)
    w_v1, b_v1 = _linear_init(keys[4], hidden, hidden)
    w_v2, b_v2 = _linear_init(keys[5], hidden, 1)
    return dict(w_feat=w_feat, b_feat=b_feat,
                w_noisy=w_noisy, b_noisy=b_noisy,
                w_a1=w_a1, b_a1=b_a1, w_a2=w_a2, b_a2=b_a2,
                w_v1=w_v1, b_v1=b_v1, w_v2=w_v2, b_v2=b_v2)


# pure-JAX reference (un-fused, original op order) for correctness sanity check
def dqn_reference(x, p):
    h = jnp.maximum(x @ p["w_feat"] + p["b_feat"], 0.0)
    h = h @ p["w_noisy"] + p["b_noisy"]
    adv = jnp.maximum(h @ p["w_a1"] + p["b_a1"], 0.0) @ p["w_a2"] + p["b_a2"]
    val = jnp.maximum(h @ p["w_v1"] + p["b_v1"], 0.0) @ p["w_v2"] + p["b_v2"]
    return val + adv - jnp.mean(adv)


if __name__ == "__main__":
    # LunarLander-v2: num_inputs=8, num_actions=4
    NUM_INPUTS, NUM_ACTIONS = 8, 4

    key = jax.random.PRNGKey(0)
    k_x, k_x2, k_p = jax.random.split(key, 3)
    params = init_dqn_params(k_p, NUM_INPUTS, NUM_ACTIONS)
    packed = pack_dqn_params(params)

    # small ".act()"-style batch (padded to 8 rows inside the wrapper)
    x_small = jax.random.normal(k_x, (4, NUM_INPUTS), jnp.float32)
    out_small = jax.block_until_ready(dqn_forward(x_small, packed, num_actions=NUM_ACTIONS))
    ref_small = dqn_reference(x_small, params)
    assert out_small.shape == (4, NUM_ACTIONS)
    assert jnp.allclose(out_small, ref_small, atol=2e-4, rtol=2e-4), "small-batch mismatch"

    # training-style batch: exercises the batch grid (300 -> padded 512 = 2 tiles of 256)
    x_big = jax.random.normal(k_x2, (300, NUM_INPUTS), jnp.float32)
    out_big = jax.block_until_ready(dqn_forward(x_big, packed, num_actions=NUM_ACTIONS))
    ref_big = dqn_reference(x_big, params)
    assert out_big.shape == (300, NUM_ACTIONS)
    assert jnp.allclose(out_big, ref_big, atol=2e-4, rtol=2e-4), "batched mismatch"

    print("KERNEL_OK")
</pallas_src>

<mosaic_0001>
module attributes {stable_mosaic.version = 11 : i64} {
  func.func @dqn_kernel(%arg0: i32, %arg1: memref<8x8xf32, #tpu.memory_space<vmem>>, %arg2: memref<8x128xf32, #tpu.memory_space<vmem>>, %arg3: memref<1x128xf32, #tpu.memory_space<vmem>>, %arg4: memref<128x256xf32, #tpu.memory_space<vmem>>, %arg5: memref<1x256xf32, #tpu.memory_space<vmem>>, %arg6: memref<256x128xf32, #tpu.memory_space<vmem>>, %arg7: memref<1x128xf32, #tpu.memory_space<vmem>>, %arg8: memref<8x128xf32, #tpu.memory_space<vmem>>) attributes {dimension_semantics = [#tpu.dimension_semantics<parallel>], iteration_bounds = array<i64: 1>, scalar_prefetch = 0 : i64, scratch_operands = 0 : i64, tpu.core_type = #tpu.core_type<tc>, window_params = [{transform_indices = @transform_0, window_bounds = array<i64: 8, 8>}, {pipeline_mode = #tpu.pipeline_mode<synchronous>, transform_indices = @transform_1, window_bounds = array<i64: 8, 128>}, {pipeline_mode = #tpu.pipeline_mode<synchronous>, transform_indices = @transform_2, window_bounds = array<i64: 1, 128>}, {pipeline_mode = #tpu.pipeline_mode<synchronous>, transform_indices = @transform_3, window_bounds = array<i64: 128, 256>}, {pipeline_mode = #tpu.pipeline_mode<synchronous>, transform_indices = @transform_4, window_bounds = array<i64: 1, 256>}, {pipeline_mode = #tpu.pipeline_mode<synchronous>, transform_indices = @transform_5, window_bounds = array<i64: 256, 128>}, {pipeline_mode = #tpu.pipeline_mode<synchronous>, transform_indices = @transform_6, window_bounds = array<i64: 1, 128>}, {transform_indices = @transform_7, window_bounds = array<i64: 8, 128>}]} {
    %c0 = arith.constant 0 : index
    %c0_0 = arith.constant 0 : index
    %0 = vector.load %arg1[%c0, %c0_0] : memref<8x8xf32, #tpu.memory_space<vmem>>, vector<8x8xf32>
    %c0_1 = arith.constant 0 : index
    %c0_2 = arith.constant 0 : index
    %1 = vector.load %arg2[%c0_1, %c0_2] : memref<8x128xf32, #tpu.memory_space<vmem>>, vector<8x128xf32>
    %cst = arith.constant dense<0.000000e+00> : vector<8x128xf32>
    %2 = tpu.matmul %0, %1, %cst {dimension_numbers = #tpu.dot_dimension_numbers<[1], [0], [0], [1], [0, 0, 1, 1], [], []>} : vector<8x8xf32>, vector<8x128xf32>, vector<8x128xf32> -> vector<8x128xf32>
    %c0_3 = arith.constant 0 : index
    %c0_4 = arith.constant 0 : index
    %3 = vector.load %arg3[%c0_3, %c0_4] : memref<1x128xf32, #tpu.memory_space<vmem>>, vector<1x128xf32>
    %4 = vector.broadcast %3 : vector<1x128xf32> to vector<8x128xf32>
    %5 = arith.addf %2, %4 : vector<8x128xf32>
    %cst_5 = arith.constant 0.000000e+00 : f32
    %6 = vector.broadcast %cst_5 : f32 to vector<8x128xf32>
    %7 = arith.maximumf %5, %6 : vector<8x128xf32>
    %c0_6 = arith.constant 0 : index
    %c0_7 = arith.constant 0 : index
    %8 = vector.load %arg4[%c0_6, %c0_7] : memref<128x256xf32, #tpu.memory_space<vmem>>, vector<128x256xf32>
    %cst_8 = arith.constant dense<0.000000e+00> : vector<8x256xf32>
    %9 = tpu.matmul %7, %8, %cst_8 {dimension_numbers = #tpu.dot_dimension_numbers<[1], [0], [0], [1], [0, 0, 1, 1], [], []>} : vector<8x128xf32>, vector<128x256xf32>, vector<8x256xf32> -> vector<8x256xf32>
    %c0_9 = arith.constant 0 : index
    %c0_10 = arith.constant 0 : index
    %10 = vector.load %arg5[%c0_9, %c0_10] : memref<1x256xf32, #tpu.memory_space<vmem>>, vector<1x256xf32>
    %11 = vector.broadcast %10 : vector<1x256xf32> to vector<8x256xf32>
    %12 = arith.addf %9, %11 : vector<8x256xf32>
    %cst_11 = arith.constant 0.000000e+00 : f32
    %13 = vector.broadcast %cst_11 : f32 to vector<8x256xf32>
    %14 = arith.maximumf %12, %13 : vector<8x256xf32>
    %c0_12 = arith.constant 0 : index
    %c0_13 = arith.constant 0 : index
    %15 = vector.load %arg6[%c0_12, %c0_13] : memref<256x128xf32, #tpu.memory_space<vmem>>, vector<256x128xf32>
    %cst_14 = arith.constant dense<0.000000e+00> : vector<8x128xf32>
    %16 = tpu.matmul %14, %15, %cst_14 {dimension_numbers = #tpu.dot_dimension_numbers<[1], [0], [0], [1], [0, 0, 1, 1], [], []>} : vector<8x256xf32>, vector<256x128xf32>, vector<8x128xf32> -> vector<8x128xf32>
    %c0_15 = arith.constant 0 : index
    %c0_16 = arith.constant 0 : index
    %17 = vector.load %arg7[%c0_15, %c0_16] : memref<1x128xf32, #tpu.memory_space<vmem>>, vector<1x128xf32>
    %18 = vector.broadcast %17 : vector<1x128xf32> to vector<8x128xf32>
    %19 = arith.addf %16, %18 : vector<8x128xf32>
    %c0_17 = arith.constant 0 : index
    %c0_18 = arith.constant 0 : index
    %20 = vector.load %arg8[%c0_17, %c0_18] : memref<8x128xf32, #tpu.memory_space<vmem>>, vector<8x128xf32>
    tpu.vector_store %arg8[%c0_17, %c0_18], %19 {strides = array<i32>} : memref<8x128xf32, #tpu.memory_space<vmem>>, vector<8x128xf32>,
    return
  }
  func.func @transform_0(%arg0: i32) -> (i32, i32) {
    %c0_i32 = arith.constant 0 : i32
    %c0_i32_0 = arith.constant 0 : i32
    return %arg0, %c0_i32 : i32, i32
  }
  func.func @transform_1(%arg0: i32) -> (i32, i32) {
    %c0_i32 = arith.constant 0 : i32
    %c0_i32_0 = arith.constant 0 : i32
    %c0_i32_1 = arith.constant 0 : i32
    return %c0_i32, %c0_i32_0 : i32, i32
  }
  func.func @transform_2(%arg0: i32) -> (i32, i32) {
    %c0_i32 = arith.constant 0 : i32
    %c0_i32_0 = arith.constant 0 : i32
    %c0_i32_1 = arith.constant 0 : i32
    return %c0_i32, %c0_i32_0 : i32, i32
  }
  func.func @transform_3(%arg0: i32) -> (i32, i32) {
    %c0_i32 = arith.constant 0 : i32
    %c0_i32_0 = arith.constant 0 : i32
    %c0_i32_1 = arith.constant 0 : i32
    return %c0_i32, %c0_i32_0 : i32, i32
  }
  func.func @transform_4(%arg0: i32) -> (i32, i32) {
    %c0_i32 = arith.constant 0 : i32
    %c0_i32_0 = arith.constant 0 : i32
    %c0_i32_1 = arith.constant 0 : i32
    return %c0_i32, %c0_i32_0 : i32, i32
  }
  func.func @transform_5(%arg0: i32) -> (i32, i32) {
    %c0_i32 = arith.constant 0 : i32
    %c0_i32_0 = arith.constant 0 : i32
    %c0_i32_1 = arith.constant 0 : i32
    return %c0_i32, %c0_i32_0 : i32, i32
  }
  func.func @transform_6(%arg0: i32) -> (i32, i32) {
    %c0_i32 = arith.constant 0 : i32
    %c0_i32_0 = arith.constant 0 : i32
    %c0_i32_1 = arith.constant 0 : i32
    return %c0_i32, %c0_i32_0 : i32, i32
  }
  func.func @transform_7(%arg0: i32) -> (i32, i32) {
    %c0_i32 = arith.constant 0 : i32
    %c0_i32_0 = arith.constant 0 : i32
    return %arg0, %c0_i32 : i32, i32
  }
}

</mosaic_0001>

<llo_original>
// kernel: dqn_forward.1
$region0: #{dqn_forward.1}
  #allocation0 [shape = 'u32[]', space=smem, size = 0x4, offset = 0x4, fixed_abs, tag = 'smem constant byte address 0x4 - core index']
  #allocation1 [shape = 'u32[72,128]{1,0:T(1,128)}', space=vmem, size = 0x9000, scoped, tag = 'internal scratch']
  %s0 = inlined_call_operand.vmem [shape: f32[8,8], index: 0, kind: input, shape index: {}]
  %s1 = inlined_call_operand.vmem [shape: f32[8,128], index: 1, kind: input, shape index: {}]
  %s2 = inlined_call_operand.vmem [shape: f32[1,128], index: 2, kind: input, shape index: {}]
  %s3 = inlined_call_operand.hbm [shape: f32[128,256], index: 3, kind: input, shape index: {}]
  %s4 = inlined_call_operand.vmem [shape: f32[1,256], index: 4, kind: input, shape index: {}]
  %s5 = inlined_call_operand.hbm [shape: f32[256,128], index: 5, kind: input, shape index: {}]
  %s6 = inlined_call_operand.vmem [shape: f32[1,128], index: 6, kind: input, shape index: {}]
  %s7 = inlined_call_operand.vmem [shape: f32[8,128], index: 7, kind: output, shape index: {}]
  %s8 = sld [smem:[#allocation0]]
  $region46: #{dqn_forward.1} parent=0
    _
  %s10 = ssub.s32 1, %s8
  %s11 = scalar_select 0, %s10, %s8
  $region1: #{dqn_forward.1} parent=0
    #allocation2 [shape = 'u8[131072]{0}', space=vmem, size = 0x20000, scoped, tag = 'input window, operand 3, single buffered']
    #allocation3 [shape = 's32[1]{0}', space=sflag, size = 0x4, scoped, tag = 'scoped memory for dqn_forward.1']
    #allocation4 [shape = 'u8[131072]{0}', space=vmem, size = 0x20000, scoped, tag = 'input window, operand 5, single buffered']
    #allocation5 [shape = 's32[1]{0}', space=sflag, size = 0x4, scoped, tag = 'scoped memory for dqn_forward.1']
    %12 = vsyncpa [#allocation3], 0
    %13 = vsyncpa [#allocation5], 0
    // Predicated region
    $region2: #{dqn_forward.1} parent=1 // pred_check
      _
    $region3: #{dqn_forward.1} parent=1 // pred_check_branch
      %15 = sbr.rel (0) target = $region5
    $region4: #{dqn_forward.1} parent=1 // pred_region
      _
    $region5: #{dqn_forward.1} parent=1 // pred_fallthru
      _
    // Predicated region
    $region6: #{dqn_forward.1} parent=1 // pred_check
      _
    $region7: #{dqn_forward.1} parent=1 // pred_check_branch
      %17 = sbr.rel (0) target = $region9
    $region8: #{dqn_forward.1} parent=1 // pred_region
      _
    $region9: #{dqn_forward.1} parent=1 // pred_fallthru
      _
    // Predicated region
    $region10: #{dqn_forward.1} parent=1 // pred_check
      _
    $region11: #{dqn_forward.1} parent=1 // pred_check_branch
      %19 = sbr.rel (0) target = $region13
    $region12: #{dqn_forward.1} parent=1 // pred_region
      _
    $region13: #{dqn_forward.1} parent=1 // pred_fallthru
      _
    // Predicated region
    $region14: #{dqn_forward.1} parent=1 // pred_check
      _
    $region15: #{dqn_forward.1} parent=1 // pred_check_branch
      %21 = sbr.rel (0) target = $region17
    $region16: #{dqn_forward.1} parent=1 // pred_region
      %23 = vsyncadd [#allocation3], 0
      %s24 = sshll.u32 %s3, 4
      %s25 = int_to_ptr.hbm [resolvable:$true] %s24
      %s26 = sshll.u32 [#allocation2], 4
      %s27 = int_to_ptr.vmem [resolvable:$true] %s26
      %32 = dma.hbm_to_vmem [thread:$0]  %s25, 4096, %s27, [#allocation3], 256, 256, 16
    $region17: #{dqn_forward.1} parent=1 // pred_fallthru
      _
    // Predicated region
    $region18: #{dqn_forward.1} parent=1 // pred_check
      _
    $region19: #{dqn_forward.1} parent=1 // pred_check_branch
      %34 = sbr.rel (0) target = $region21
    $region20: #{dqn_forward.1} parent=1 // pred_region
      _
    $region21: #{dqn_forward.1} parent=1 // pred_fallthru
      _
    // Predicated region
    $region22: #{dqn_forward.1} parent=1 // pred_check
      _
    $region23: #{dqn_forward.1} parent=1 // pred_check_branch
      %36 = sbr.rel (0) target = $region25
    $region24: #{dqn_forward.1} parent=1 // pred_region
      %38 = vsyncadd [#allocation5], 0
      %s39 = sshll.u32 %s5, 4
      %s40 = int_to_ptr.hbm [resolvable:$true] %s39
      %s41 = sshll.u32 [#allocation4], 4
      %s42 = int_to_ptr.vmem [resolvable:$true] %s41
      %47 = dma.hbm_to_vmem [thread:$0]  %s40, 4096, %s42, [#allocation5], 128, 128, 8
    $region25: #{dqn_forward.1} parent=1 // pred_fallthru
      _
    // Predicated region
    $region26: #{dqn_forward.1} parent=1 // pred_check
      _
    $region27: #{dqn_forward.1} parent=1 // pred_check_branch
      %49 = sbr.rel (0) target = $region29
    $region28: #{dqn_forward.1} parent=1 // pred_region
      _
    $region29: #{dqn_forward.1} parent=1 // pred_fallthru
      _
    // Predicated region
    $region30: #{dqn_forward.1} parent=1 // pred_check
      _
    $region31: #{dqn_forward.1} parent=1 // pred_check_branch
      %51 = sbr.rel (0) target = $region33
    $region32: #{dqn_forward.1} parent=1 // pred_region
      %53 = dma.done [#allocation3], 4096
    $region33: #{dqn_forward.1} parent=1 // pred_fallthru
      _
    // Predicated region
    $region34: #{dqn_forward.1} parent=1 // pred_check
      _
    $region35: #{dqn_forward.1} parent=1 // pred_check_branch
      %55 = sbr.rel (0) target = $region37
    $region36: #{dqn_forward.1} parent=1 // pred_region
      %57 = dma.done [#allocation5], 4096
    $region37: #{dqn_forward.1} parent=1 // pred_fallthru
      _
    %v58 = vld [vmem:[%s0] sm:$0xff]
    %v59 = vld [vmem:[%s1] sm:$0xff]
    %v60 = vld [vmem:[%s2] sm:$0x1]
    %v62 = vperm.slane %v60, 0
    %vm64 = vcmask 64512
    %v66 = vsel %vm64, %v58, 0
    %68 = vmatpush.msra.mxu0 0.0
    %69 = vmatpush.msra.mxu0 0.0
    %70 = vmatpush.msra.mxu0 0.0
    %71 = vmatpush.msra.mxu0 0.0
    %72 = vmatpush.msra.mxu0 0.0
    %73 = vmatpush.msra.mxu0 0.0
    %74 = vmatpush.msra.mxu0 0.0
    %75 = vmatpush.msra.mxu0 0.0
    %76 = vmatpush.msra.mxu0 0.0
    %77 = vmatpush.msra.mxu0 0.0
    %78 = vmatpush.msra.mxu0 0.0
    %79 = vmatpush.msra.mxu0 0.0
    %80 = vmatpush.msra.mxu0 0.0
    %81 = vmatpush.msra.mxu0 0.0
    %82 = vmatpush.msra.mxu0 0.0
    %83 = vmatpush.msra.mxu0 %v59
    %84 = vmatmul.f32.gmra.mxu0 %v66
    %v85 = vpop.f32.mrf.mxu0
    %v86 = vadd.f32 %v62, %v85
    %87 = vdwg.mxu0
    %v88 = vmax.f32 %v86, 0.0
    %v89 = vld [vmem:[#allocation2] sm:$0xff]
    %v90 = vld [vmem:[#allocation2 + $0x8] sm:$0xff]
    %v91 = vld [vmem:[#allocation2 + $0x10] sm:$0xff]
    %v92 = vld [vmem:[#allocation2 + $0x18] sm:$0xff]
    %v93 = vld [vmem:[#allocation2 + $0x20] sm:$0xff]
    %v94 = vld [vmem:[#allocation2 + $0x28] sm:$0xff]
    %v95 = vld [vmem:[#allocation2 + $0x30] sm:$0xff]
    %v96 = vld [vmem:[#allocation2 + $0x38] sm:$0xff]
    %v97 = vld [vmem:[#allocation2 + $0x40] sm:$0xff]
    %v98 = vld [vmem:[#allocation2 + $0x48] sm:$0xff]
    %v99 = vld [vmem:[#allocation2 + $0x50] sm:$0xff]
    %v100 = vld [vmem:[#allocation2 + $0x58] sm:$0xff]
    %v101 = vld [vmem:[#allocation2 + $0x60] sm:$0xff]
    %v102 = vld [vmem:[#allocation2 + $0x68] sm:$0xff]
    %v103 = vld [vmem:[#allocation2 + $0x70] sm:$0xff]
    %v104 = vld [vmem:[#allocation2 + $0x78] sm:$0xff]
    %v105 = vld [vmem:[#allocation2 + $0x80] sm:$0xff]
    %v106 = vld [vmem:[#allocation2 + $0x88] sm:$0xff]
    %v107 = vld [vmem:[#allocation2 + $0x90] sm:$0xff]
    %v108 = vld [vmem:[#allocation2 + $0x98] sm:$0xff]
    %v109 = vld [vmem:[#allocation2 + $0xa0] sm:$0xff]
    %v110 = vld [vmem:[#allocation2 + $0xa8] sm:$0xff]
    %v111 = vld [vmem:[#allocation2 + $0xb0] sm:$0xff]
    %v112 = vld [vmem:[#allocation2 + $0xb8] sm:$0xff]
    %v113 = vld [vmem:[#allocation2 + $0xc0] sm:$0xff]
    %v114 = vld [vmem:[#allocation2 + $0xc8] sm:$0xff]
    %v115 = vld [vmem:[#allocation2 + $0xd0] sm:$0xff]
    %v116 = vld [vmem:[#allocation2 + $0xd8] sm:$0xff]
    %v117 = vld [vmem:[#allocation2 + $0xe0] sm:$0xff]
    %v118 = vld [vmem:[#allocation2 + $0xe8] sm:$0xff]
    %v119 = vld [vmem:[#allocation2 + $0xf0] sm:$0xff]
    %v120 = vld [vmem:[#allocation2 + $0xf8] sm:$0xff]
    %v121 = vld [vmem:[%s4] sm:$0x3]
    %v123 = vperm.slane %v121, 0
    %v124 = vperm.slane %v121, 1
    %127 = vmatpush.msra.mxu0 %v119
    %128 = vmatpush.msra.mxu0 %v117
    %129 = vmatpush.msra.mxu0 %v115
    %130 = vmatpush.msra.mxu0 %v113
    %131 = vmatpush.msra.mxu0 %v111
    %132 = vmatpush.msra.mxu0 %v109
    %133 = vmatpush.msra.mxu0 %v107
    %134 = vmatpush.msra.mxu0 %v105
    %135 = vmatpush.msra.mxu0 %v103
    %136 = vmatpush.msra.mxu0 %v101
    %137 = vmatpush.msra.mxu0 %v99
    %138 = vmatpush.msra.mxu0 %v97
    %139 = vmatpush.msra.mxu0 %v95
    %140 = vmatpush.msra.mxu0 %v93
    %141 = vmatpush.msra.mxu0 %v91
    %142 = vmatpush.msra.mxu0 %v89
    %143 = vmatmul.f32.gmra.mxu0 %v88
    %v144 = vpop.f32.mrf.mxu0
    %v145 = vadd.f32 %v123, %v144
    %146 = vdwg.mxu0
    %147 = vmatpush.msra.mxu0 %v120
    %148 = vmatpush.msra.mxu0 %v118
    %149 = vmatpush.msra.mxu0 %v116
    %150 = vmatpush.msra.mxu0 %v114
    %151 = vmatpush.msra.mxu0 %v112
    %152 = vmatpush.msra.mxu0 %v110
    %153 = vmatpush.msra.mxu0 %v108
    %154 = vmatpush.msra.mxu0 %v106
    %155 = vmatpush.msra.mxu0 %v104
    %156 = vmatpush.msra.mxu0 %v102
    %157 = vmatpush.msra.mxu0 %v100
    %158 = vmatpush.msra.mxu0 %v98
    %159 = vmatpush.msra.mxu0 %v96
    %160 = vmatpush.msra.mxu0 %v94
    %161 = vmatpush.msra.mxu0 %v92
    %162 = vmatpush.msra.mxu0 %v90
    %163 = vmatmul.f32.gmra.mxu0 %v88
    %v164 = vpop.f32.mrf.mxu0
    %v165 = vadd.f32 %v124, %v164
    %166 = vdwg.mxu0
    %v167 = vmax.f32 %v145, 0.0
    %v168 = vmax.f32 %v165, 0.0
    %v169 = vld [vmem:[#allocation4] sm:$0xff]
    %v170 = vld [vmem:[#allocation4 + $0x8] sm:$0xff]
    %v171 = vld [vmem:[#allocation4 + $0x10] sm:$0xff]
    %v172 = vld [vmem:[#allocation4 + $0x18] sm:$0xff]
    %v173 = vld [vmem:[#allocation4 + $0x20] sm:$0xff]
    %v174 = vld [vmem:[#allocation4 + $0x28] sm:$0xff]
    %v175 = vld [vmem:[#allocation4 + $0x30] sm:$0xff]
    %v176 = vld [vmem:[#allocation4 + $0x38] sm:$0xff]
    %v177 = vld [vmem:[#allocation4 + $0x40] sm:$0xff]
    %v178 = vld [vmem:[#allocation4 + $0x48] sm:$0xff]
    %v179 = vld [vmem:[#allocation4 + $0x50] sm:$0xff]
    %v180 = vld [vmem:[#allocation4 + $0x58] sm:$0xff]
    %v181 = vld [vmem:[#allocation4 + $0x60] sm:$0xff]
    %v182 = vld [vmem:[#allocation4 + $0x68] sm:$0xff]
    %v183 = vld [vmem:[#allocation4 + $0x70] sm:$0xff]
    %v184 = vld [vmem:[#allocation4 + $0x78] sm:$0xff]
    %v185 = vld [vmem:[#allocation4 + $0x80] sm:$0xff]
    %v186 = vld [vmem:[#allocation4 + $0x88] sm:$0xff]
    %v187 = vld [vmem:[#allocation4 + $0x90] sm:$0xff]
    %v188 = vld [vmem:[#allocation4 + $0x98] sm:$0xff]
    %v189 = vld [vmem:[#allocation4 + $0xa0] sm:$0xff]
    %v190 = vld [vmem:[#allocation4 + $0xa8] sm:$0xff]
    %v191 = vld [vmem:[#allocation4 + $0xb0] sm:$0xff]
    %v192 = vld [vmem:[#allocation4 + $0xb8] sm:$0xff]
    %v193 = vld [vmem:[#allocation4 + $0xc0] sm:$0xff]
    %v194 = vld [vmem:[#allocation4 + $0xc8] sm:$0xff]
    %v195 = vld [vmem:[#allocation4 + $0xd0] sm:$0xff]
    %v196 = vld [vmem:[#allocation4 + $0xd8] sm:$0xff]
    %v197 = vld [vmem:[#allocation4 + $0xe0] sm:$0xff]
    %v198 = vld [vmem:[#allocation4 + $0xe8] sm:$0xff]
    %v199 = vld [vmem:[#allocation4 + $0xf0] sm:$0xff]
    %v200 = vld [vmem:[#allocation4 + $0xf8] sm:$0xff]
    %v201 = vld [vmem:[%s6] sm:$0x1]
    %v203 = vperm.slane %v201, 0
    %205 = vmatpush.msra.mxu0 %v184
    %206 = vmatpush.msra.mxu0 %v183
    %207 = vmatpush.msra.mxu0 %v182
    %208 = vmatpush.msra.mxu0 %v181
    %209 = vmatpush.msra.mxu0 %v180
    %210 = vmatpush.msra.mxu0 %v179
    %211 = vmatpush.msra.mxu0 %v178
    %212 = vmatpush.msra.mxu0 %v177
    %213 = vmatpush.msra.mxu0 %v176
    %214 = vmatpush.msra.mxu0 %v175
    %215 = vmatpush.msra.mxu0 %v174
    %216 = vmatpush.msra.mxu0 %v173
    %217 = vmatpush.msra.mxu0 %v172
    %218 = vmatpush.msra.mxu0 %v171
    %219 = vmatpush.msra.mxu0 %v170
    %220 = vmatpush.msra.mxu0 %v169
    %221 = vmatmul.f32.gmra.mxu0 %v167
    %v222 = vpop.f32.mrf.mxu0
    %v223 = vadd.f32 %v203, %v222
    %224 = vdwg.mxu0
    %225 = vmatpush.msra.mxu0 %v200
    %226 = vmatpush.msra.mxu0 %v199
    %227 = vmatpush.msra.mxu0 %v198
    %228 = vmatpush.msra.mxu0 %v197
    %229 = vmatpush.msra.mxu0 %v196
    %230 = vmatpush.msra.mxu0 %v195
    %231 = vmatpush.msra.mxu0 %v194
    %232 = vmatpush.msra.mxu0 %v193
    %233 = vmatpush.msra.mxu0 %v192
    %234 = vmatpush.msra.mxu0 %v191
    %235 = vmatpush.msra.mxu0 %v190
    %236 = vmatpush.msra.mxu0 %v189
    %237 = vmatpush.msra.mxu0 %v188
    %238 = vmatpush.msra.mxu0 %v187
    %239 = vmatpush.msra.mxu0 %v186
    %240 = vmatpush.msra.mxu0 %v185
    %241 = vmatmul.f32.gmra.mxu0 %v168
    %v242 = vpop.f32.mrf.mxu0
    %v243 = vadd.f32 %v223, %v242
    %244 = vdwg.mxu0
    %245 = vst [vmem:[%s7] sm:$0xff] %v243
    // Predicated region
    $region38: #{dqn_forward.1} parent=1 // pred_check
      _
    $region39: #{dqn_forward.1} parent=1 // pred_check_branch
      %247 = sbr.rel (0) target = $region41
    $region40: #{dqn_forward.1} parent=1 // pred_region
      _
    $region41: #{dqn_forward.1} parent=1 // pred_fallthru
      _
    // Predicated region
    $region42: #{dqn_forward.1} parent=1 // pred_check
      _
    $region43: #{dqn_forward.1} parent=1 // pred_check_branch
      %249 = sbr.rel (0) target = $region45
    $region44: #{dqn_forward.1} parent=1 // pred_region
      _
    $region45: #{dqn_forward.1} parent=1 // pred_fallthru
      _
    %250 = vsyncpa [#allocation3], 1
    %251 = vsyncpa [#allocation5], 1

</llo_original>
